<compile_context>
chip_gen: v6e
topology: v6e:2x2x1
jax: 0.10.0
libtpu: 0.0.40
codegen_flags: <defaults>
</compile_context>

<pallas_src>
import functools

import jax
import jax.numpy as jnp
from jax.experimental import pallas as pl
from jax.experimental.pallas import tpu as pltpu


# --------------------------------------------------------------------------
# Pallas kernel
# --------------------------------------------------------------------------
def _patch_proj_kernel(p_ref, w_ref, b_ref, out_ref):
    """One M-tile of the patch projection: out = p @ w + b.

    Blocks: p: (TM, K) bf16; w: (K, H) bf16; b: (1, H) f32; out: (TM, H) f32.
    """
    acc = jnp.dot(p_ref[...], w_ref[...], preferred_element_type=jnp.float32)
    out_ref[...] = (acc + b_ref[...]).astype(out_ref.dtype)


# --------------------------------------------------------------------------
# Wrappers / glue
# --------------------------------------------------------------------------
def prepare_projection_params(conv_w, conv_b):
    """One-time prep: Conv2d weight [H, C, ph, pw] -> bf16 [C*ph*pw, H]; bias -> (1, H) f32."""
    hidden = conv_w.shape[0]
    w_flat = conv_w.reshape(hidden, -1).T.astype(jnp.bfloat16)     # (K, H)
    bias2 = conv_b.reshape(1, hidden).astype(jnp.float32)          # (1, H)
    return w_flat, bias2


def extract_patches(pixel_values, ph, pw):
    """NCHW -> [B*num_patches, C*ph*pw], patch-major over (grid_h, grid_w)."""
    B, C, Hh, Ww = pixel_values.shape
    gh, gw = Hh // ph, Ww // pw
    x = pixel_values.reshape(B, C, gh, ph, gw, pw)
    x = x.transpose(0, 2, 4, 1, 3, 5)                              # B, gh, gw, C, ph, pw
    return x.reshape(B * gh * gw, C * ph * pw)


def patch_projection_pallas(patches_bf16, w_flat, bias2, *, tile_m=128):
    """(M, K) bf16 @ (K, H) bf16 + bias -> (M, H) f32, tiled over M."""
    M, K = patches_bf16.shape
    H = w_flat.shape[1]
    num_tiles = pl.cdiv(M, tile_m)
    Mp = num_tiles * tile_m
    if Mp != M:
        patches_bf16 = jnp.pad(patches_bf16, ((0, Mp - M), (0, 0)))

    out = pl.pallas_call(
        _patch_proj_kernel,
        out_shape=jax.ShapeDtypeStruct((Mp, H), jnp.float32),
        grid=(num_tiles,),
        in_specs=[
            pl.BlockSpec((tile_m, K), lambda i: (i, 0)),   # streamed activations
            pl.BlockSpec((K, H), lambda i: (0, 0)),        # grid-invariant weight
            pl.BlockSpec((1, H), lambda i: (0, 0)),        # grid-invariant bias
        ],
        out_specs=pl.BlockSpec((tile_m, H), lambda i: (i, 0)),
        compiler_params=pltpu.CompilerParams(
            dimension_semantics=("parallel",)),
    )(patches_bf16, w_flat, bias2)
    return out[:M] if Mp != M else out


def vilt_patch_embeddings_forward(w_flat, bias2, pixel_values, *, patch_size,
                                  tile_m=128):
    """Matches ViltPatchEmbeddings.forward: returns [B, hidden, H//p, W//p]."""
    B, C, Hh, Ww = pixel_values.shape
    ph = pw = patch_size
    gh, gw = Hh // ph, Ww // pw
    hidden = w_flat.shape[1]

    patches = extract_patches(pixel_values, ph, pw).astype(jnp.bfloat16)
    y = patch_projection_pallas(patches, w_flat, bias2, tile_m=tile_m)  # (B*P, H)
    # Back to the Conv2d NCHW output layout of the PyTorch module (layout
    # plumbing only; the kernel itself writes lane-dense (TM, H) tiles).
    return y.reshape(B, gh, gw, hidden).transpose(0, 3, 1, 2)


def vilt_patch_embeddings_reference(conv_w, conv_b, pixel_values, *, patch_size):
    """Pure-JAX f32 reference: the actual strided Conv2d."""
    out = jax.lax.conv_general_dilated(
        pixel_values, conv_w,
        window_strides=(patch_size, patch_size), padding="VALID",
        dimension_numbers=("NCHW", "OIHW", "NCHW"),
        precision=jax.lax.Precision.HIGHEST)
    return out + conv_b.reshape(1, -1, 1, 1)


# --------------------------------------------------------------------------
# Main
# --------------------------------------------------------------------------
if __name__ == "__main__":
    B, C = 2, 3
    image_size, patch_size, hidden = 32, 4, 128
    gh = image_size // patch_size
    num_patches = gh * gh                      # 64 -> M = B * 64 = 128 rows

    key = jax.random.PRNGKey(0)
    k_w, k_b, k_x = jax.random.split(key, 3)
    conv_w = (0.02 * jax.random.normal(
        k_w, (hidden, C, patch_size, patch_size))).astype(jnp.float32)
    conv_b = (0.02 * jax.random.normal(k_b, (hidden,))).astype(jnp.float32)
    pixel_values = jax.random.normal(
        k_x, (B, C, image_size, image_size), jnp.float32)

    # One-time parameter prep (hoisted out of the forward path).
    w_flat, bias2 = prepare_projection_params(conv_w, conv_b)

    fwd = jax.jit(functools.partial(
        vilt_patch_embeddings_forward, patch_size=patch_size, tile_m=128))
    out = fwd(w_flat, bias2, pixel_values)
    jax.block_until_ready(out)

    assert out.shape == (B, hidden, gh, gh), out.shape

    # Tight check vs a reference using the same bf16-rounded operands
    # (kernel accumulates in f32 on the MXU).
    patches_f32 = extract_patches(pixel_values, patch_size, patch_size)
    ref_rounded = jnp.dot(
        patches_f32.astype(jnp.bfloat16).astype(jnp.float32),
        w_flat.astype(jnp.float32),
        precision=jax.lax.Precision.HIGHEST) + conv_b
    ref_rounded = ref_rounded.reshape(B, gh, gh, hidden).transpose(0, 3, 1, 2)
    assert jnp.allclose(out, ref_rounded, rtol=1e-5, atol=1e-5), (
        float(jnp.abs(out - ref_rounded).max()))

    # Looser sanity check vs the true f32 Conv2d (bf16 operand rounding only).
    ref_f32 = vilt_patch_embeddings_reference(
        conv_w, conv_b, pixel_values, patch_size=patch_size)
    assert jnp.allclose(out, ref_f32, rtol=3e-2, atol=3e-2), (
        float(jnp.abs(out - ref_f32).max()))

    print("KERNEL_OK")
</pallas_src>

<mosaic_0001>
module attributes {stable_mosaic.version = 11 : i64} {
  func.func @_patch_proj_kernel(%arg0: i32, %arg1: memref<128x48xbf16, #tpu.memory_space<vmem>>, %arg2: memref<48x128xbf16, #tpu.memory_space<vmem>>, %arg3: memref<1x128xf32, #tpu.memory_space<vmem>>, %arg4: memref<128x128xf32, #tpu.memory_space<vmem>>) attributes {dimension_semantics = [#tpu.dimension_semantics<parallel>], iteration_bounds = array<i64: 1>, scalar_prefetch = 0 : i64, scratch_operands = 0 : i64, tpu.core_type = #tpu.core_type<tc>, window_params = [{transform_indices = @transform_0, window_bounds = array<i64: 128, 48>}, {pipeline_mode = #tpu.pipeline_mode<synchronous>, transform_indices = @transform_1, window_bounds = array<i64: 48, 128>}, {pipeline_mode = #tpu.pipeline_mode<synchronous>, transform_indices = @transform_2, window_bounds = array<i64: 1, 128>}, {transform_indices = @transform_3, window_bounds = array<i64: 128, 128>}]} {
    %c0 = arith.constant 0 : index
    %c0_0 = arith.constant 0 : index
    %0 = vector.load %arg1[%c0, %c0_0] : memref<128x48xbf16, #tpu.memory_space<vmem>>, vector<128x48xbf16>
    %c0_1 = arith.constant 0 : index
    %c0_2 = arith.constant 0 : index
    %1 = vector.load %arg2[%c0_1, %c0_2] : memref<48x128xbf16, #tpu.memory_space<vmem>>, vector<48x128xbf16>
    %cst = arith.constant dense<0.000000e+00> : vector<128x128xf32>
    %2 = tpu.matmul %0, %1, %cst {dimension_numbers = #tpu.dot_dimension_numbers<[1], [0], [0], [1], [0, 0, 1, 1], [], []>} : vector<128x48xbf16>, vector<48x128xbf16>, vector<128x128xf32> -> vector<128x128xf32>
    %c0_3 = arith.constant 0 : index
    %c0_4 = arith.constant 0 : index
    %3 = vector.load %arg3[%c0_3, %c0_4] : memref<1x128xf32, #tpu.memory_space<vmem>>, vector<1x128xf32>
    %4 = vector.broadcast %3 : vector<1x128xf32> to vector<128x128xf32>
    %5 = arith.addf %2, %4 : vector<128x128xf32>
    %c0_5 = arith.constant 0 : index
    %c0_6 = arith.constant 0 : index
    %6 = vector.load %arg4[%c0_5, %c0_6] : memref<128x128xf32, #tpu.memory_space<vmem>>, vector<128x128xf32>
    tpu.vector_store %arg4[%c0_5, %c0_6], %5 {strides = array<i32>} : memref<128x128xf32, #tpu.memory_space<vmem>>, vector<128x128xf32>,
    return
  }
  func.func @transform_0(%arg0: i32) -> (i32, i32) {
    %c0_i32 = arith.constant 0 : i32
    %c0_i32_0 = arith.constant 0 : i32
    return %arg0, %c0_i32 : i32, i32
  }
  func.func @transform_1(%arg0: i32) -> (i32, i32) {
    %c0_i32 = arith.constant 0 : i32
    %c0_i32_0 = arith.constant 0 : i32
    %c0_i32_1 = arith.constant 0 : i32
    return %c0_i32, %c0_i32_0 : i32, i32
  }
  func.func @transform_2(%arg0: i32) -> (i32, i32) {
    %c0_i32 = arith.constant 0 : i32
    %c0_i32_0 = arith.constant 0 : i32
    %c0_i32_1 = arith.constant 0 : i32
    return %c0_i32, %c0_i32_0 : i32, i32
  }
  func.func @transform_3(%arg0: i32) -> (i32, i32) {
    %c0_i32 = arith.constant 0 : i32
    %c0_i32_0 = arith.constant 0 : i32
    return %arg0, %c0_i32 : i32, i32
  }
}

</mosaic_0001>

<llo_original>
// kernel: vilt_patch_embeddings_forward.1
$region0: #{vilt_patch_embeddings_forward.1}
  #allocation0 [shape = 'u32[]', space=smem, size = 0x4, offset = 0x4, fixed_abs, tag = 'smem constant byte address 0x4 - core index']
  #allocation1 [shape = 'u32[144,128]{1,0:T(1,128)}', space=vmem, size = 0x12000, scoped, tag = 'internal scratch']
  %s0 = inlined_call_operand.vmem [shape: bf16[128,48], index: 0, kind: input, shape index: {}]
  %s1 = inlined_call_operand.vmem [shape: bf16[48,128], index: 1, kind: input, shape index: {}]
  %s2 = inlined_call_operand.vmem [shape: f32[1,128], index: 2, kind: input, shape index: {}]
  %s3 = inlined_call_operand.hbm [shape: f32[128,128], index: 3, kind: output, shape index: {}]
  %s4 = sld [smem:[#allocation0]]
  $region22: #{vilt_patch_embeddings_forward.1} parent=0
    _
  %s6 = ssub.s32 1, %s4
  %s7 = scalar_select 0, %s6, %s4
  $region1: #{vilt_patch_embeddings_forward.1} parent=0
    #allocation2 [shape = 'u8[65536]{0}', space=vmem, size = 0x10000, scoped, tag = 'output window, operand 0, single buffered']
    #allocation3 [shape = 's32[1]{0}', space=sflag, size = 0x4, scoped, tag = 'scoped memory for vilt_patch_embeddings_forward.1']
    %8 = vsyncpa [#allocation3], 0
    // Predicated region
    $region2: #{vilt_patch_embeddings_forward.1} parent=1 // pred_check
      _
    $region3: #{vilt_patch_embeddings_forward.1} parent=1 // pred_check_branch
      %10 = sbr.rel (0) target = $region5
    $region4: #{vilt_patch_embeddings_forward.1} parent=1 // pred_region
      _
    $region5: #{vilt_patch_embeddings_forward.1} parent=1 // pred_fallthru
      _
    // Predicated region
    $region6: #{vilt_patch_embeddings_forward.1} parent=1 // pred_check
      _
    $region7: #{vilt_patch_embeddings_forward.1} parent=1 // pred_check_branch
      %12 = sbr.rel (0) target = $region9
    $region8: #{vilt_patch_embeddings_forward.1} parent=1 // pred_region
      _
    $region9: #{vilt_patch_embeddings_forward.1} parent=1 // pred_fallthru
      _
    // Predicated region
    $region10: #{vilt_patch_embeddings_forward.1} parent=1 // pred_check
      _
    $region11: #{vilt_patch_embeddings_forward.1} parent=1 // pred_check_branch
      %14 = sbr.rel (0) target = $region13
    $region12: #{vilt_patch_embeddings_forward.1} parent=1 // pred_region
      _
    $region13: #{vilt_patch_embeddings_forward.1} parent=1 // pred_fallthru
      _
    %v16 = vld [vmem:[%s0] sm:$0xf]
    %v17 = vld [vmem:[%s0 + $0x4] sm:$0xf]
    %v18 = vld [vmem:[%s0 + $0x8] sm:$0xf]
    %v19 = vld [vmem:[%s0 + $0xc] sm:$0xf]
    %v20 = vld [vmem:[%s0 + $0x10] sm:$0xf]
    %v21 = vld [vmem:[%s0 + $0x14] sm:$0xf]
    %v22 = vld [vmem:[%s0 + $0x18] sm:$0xf]
    %v23 = vld [vmem:[%s0 + $0x1c] sm:$0xf]
    %v24 = vld [vmem:[%s0 + $0x20] sm:$0xf]
    %v25 = vld [vmem:[%s0 + $0x24] sm:$0xf]
    %v26 = vld [vmem:[%s0 + $0x28] sm:$0xf]
    %v27 = vld [vmem:[%s0 + $0x2c] sm:$0xf]
    %v28 = vld [vmem:[%s0 + $0x30] sm:$0xf]
    %v29 = vld [vmem:[%s0 + $0x34] sm:$0xf]
    %v30 = vld [vmem:[%s0 + $0x38] sm:$0xf]
    %v31 = vld [vmem:[%s0 + $0x3c] sm:$0xf]
    %v32 = vld [vmem:[%s1] sm:$0xf]
    %v33 = vld [vmem:[%s1 + $0x4] sm:$0xf]
    %v34 = vld [vmem:[%s1 + $0x8] sm:$0xf]
    %v35 = vld [vmem:[%s1 + $0xc] sm:$0xf]
    %v36 = vld [vmem:[%s1 + $0x10] sm:$0xf]
    %v37 = vld [vmem:[%s1 + $0x14] sm:$0xf]
    %v38 = vld [vmem:[%s2] sm:$0x1]
    %v40 = vlaneseq
    %v41 = vshrl.u32 %v40, 7
    %v42 = vsub.s32 0, %v41
    %v43 = vrot.slane %v38, %v42
    %v61 = vunpack.c.l.b16 %v16
    %v62 = vunpack.c.l.b16 %v17
    %v63 = vunpack.c.l.b16 %v18
    %v64 = vunpack.c.l.b16 %v19
    %v65 = vunpack.c.l.b16 %v20
    %v66 = vunpack.c.l.b16 %v21
    %v67 = vunpack.c.l.b16 %v22
    %v68 = vunpack.c.l.b16 %v23
    %v69 = vunpack.c.l.b16 %v24
    %v70 = vunpack.c.l.b16 %v25
    %v71 = vunpack.c.l.b16 %v26
    %v72 = vunpack.c.l.b16 %v27
    %v73 = vunpack.c.l.b16 %v28
    %v74 = vunpack.c.l.b16 %v29
    %v75 = vunpack.c.l.b16 %v30
    %v76 = vunpack.c.l.b16 %v31
    %v77 = vpack.c.b16 %v62, %v61
    %v78 = vpack.c.b16 %v64, %v63
    %v79 = vpack.c.b16 %v66, %v65
    %v80 = vpack.c.b16 %v68, %v67
    %v81 = vpack.c.b16 %v70, %v69
    %v82 = vpack.c.b16 %v72, %v71
    %v83 = vpack.c.b16 %v74, %v73
    %v84 = vpack.c.b16 %v76, %v75
    %v91 = vunpack.c.l.b16 %v32
    %v92 = vunpack.c.l.b16 %v33
    %v93 = vunpack.c.l.b16 %v34
    %v94 = vunpack.c.l.b16 %v35
    %v95 = vunpack.c.l.b16 %v36
    %v96 = vunpack.c.l.b16 %v37
    %v97 = vpack.c.b16 %v92, %v91
    %v98 = vpack.c.b16 %v94, %v93
    %v99 = vpack.c.b16 %v96, %v95
    %vm103 = vcmask 392192
    %v105 = vsel %vm103, %v77, 0
    %v108 = vsel %vm103, %v78, 0
    %v111 = vsel %vm103, %v79, 0
    %v114 = vsel %vm103, %v80, 0
    %v117 = vsel %vm103, %v81, 0
    %v120 = vsel %vm103, %v82, 0
    %v123 = vsel %vm103, %v83, 0
    %v126 = vsel %vm103, %v84, 0
    %128 = vmatprep.subr.bf16.mxu0 0
    %129 = vmatpush1.bf16.msra.mxu0 0
    %130 = vmatprep.subr.bf16.mxu0 0
    %131 = vmatpush1.bf16.msra.mxu0 0
    %132 = vmatprep.subr.bf16.mxu0 0
    %133 = vmatpush1.bf16.msra.mxu0 0
    %134 = vmatprep.subr.bf16.mxu0 0
    %135 = vmatpush1.bf16.msra.mxu0 0
    %136 = vmatprep.subr.bf16.mxu0 0
    %137 = vmatpush1.bf16.msra.mxu0 0
    %138 = vmatprep.subr.bf16.mxu0 0
    %139 = vmatpush1.bf16.msra.mxu0 %v99
    %140 = vmatprep.subr.bf16.mxu0 0
    %141 = vmatpush1.bf16.msra.mxu0 %v98
    %142 = vmatprep.subr.bf16.mxu0 0
    %143 = vmatpush1.bf16.msra.mxu0 %v97
    %144 = vmatprep.subr.bf16.mxu0 0
    %145 = vmatpush2.bf16.msra.mxu0 0
    %146 = vmatprep.subr.bf16.mxu0 0
    %147 = vmatpush2.bf16.msra.mxu0 0
    %148 = vmatprep.subr.bf16.mxu0 0
    %149 = vmatpush2.bf16.msra.mxu0 0
    %150 = vmatprep.subr.bf16.mxu0 0
    %151 = vmatpush2.bf16.msra.mxu0 0
    %152 = vmatprep.subr.bf16.mxu0 0
    %153 = vmatpush2.bf16.msra.mxu0 0
    %154 = vmatprep.subr.bf16.mxu0 0
    %155 = vmatpush2.bf16.msra.mxu0 0
    %156 = vmatprep.subr.bf16.mxu0 0
    %157 = vmatpush2.bf16.msra.mxu0 0
    %158 = vmatprep.subr.bf16.mxu0 0
    %159 = vmatpush2.bf16.msra.mxu0 0
    %160 = vmatprep.mubr.bf16.mxu0 0
    %161 = vmatmul.mubr.bf16.gmra.mxu0 %v105
    %v162 = vpop.f32.mrf.mxu0
    %v163 = vadd.f32 %v43, %v162
    %v164 = vpop.f32.mrf.mxu0
    %v165 = vpop.f32.mrf.mxu0
    %v166 = vadd.f32 %v43, %v165
    %v167 = vpop.f32.mrf.mxu0
    %168 = vmatprep.mubr.bf16.mxu0 0
    %169 = vmatmul.mubr.bf16.gmra.mxu0 %v108
    %v170 = vpop.f32.mrf.mxu0
    %v171 = vadd.f32 %v43, %v170
    %v172 = vpop.f32.mrf.mxu0
    %v173 = vpop.f32.mrf.mxu0
    %v174 = vadd.f32 %v43, %v173
    %v175 = vpop.f32.mrf.mxu0
    %176 = vmatprep.mubr.bf16.mxu0 0
    %177 = vmatmul.mubr.bf16.gmra.mxu0 %v111
    %v178 = vpop.f32.mrf.mxu0
    %v179 = vadd.f32 %v43, %v178
    %v180 = vpop.f32.mrf.mxu0
    %v181 = vpop.f32.mrf.mxu0
    %v182 = vadd.f32 %v43, %v181
    %v183 = vpop.f32.mrf.mxu0
    %184 = vmatprep.mubr.bf16.mxu0 0
    %185 = vmatmul.mubr.bf16.gmra.mxu0 %v114
    %v186 = vpop.f32.mrf.mxu0
    %v187 = vadd.f32 %v43, %v186
    %v188 = vpop.f32.mrf.mxu0
    %v189 = vpop.f32.mrf.mxu0
    %v190 = vadd.f32 %v43, %v189
    %v191 = vpop.f32.mrf.mxu0
    %192 = vmatprep.mubr.bf16.mxu0 0
    %193 = vmatmul.mubr.bf16.gmra.mxu0 %v117
    %v194 = vpop.f32.mrf.mxu0
    %v195 = vadd.f32 %v43, %v194
    %v196 = vpop.f32.mrf.mxu0
    %v197 = vpop.f32.mrf.mxu0
    %v198 = vadd.f32 %v43, %v197
    %v199 = vpop.f32.mrf.mxu0
    %200 = vmatprep.mubr.bf16.mxu0 0
    %201 = vmatmul.mubr.bf16.gmra.mxu0 %v120
    %v202 = vpop.f32.mrf.mxu0
    %v203 = vadd.f32 %v43, %v202
    %v204 = vpop.f32.mrf.mxu0
    %v205 = vpop.f32.mrf.mxu0
    %v206 = vadd.f32 %v43, %v205
    %v207 = vpop.f32.mrf.mxu0
    %208 = vmatprep.mubr.bf16.mxu0 0
    %209 = vmatmul.mubr.bf16.gmra.mxu0 %v123
    %v210 = vpop.f32.mrf.mxu0
    %v211 = vadd.f32 %v43, %v210
    %v212 = vpop.f32.mrf.mxu0
    %v213 = vpop.f32.mrf.mxu0
    %v214 = vadd.f32 %v43, %v213
    %v215 = vpop.f32.mrf.mxu0
    %216 = vmatprep.mubr.bf16.mxu0 0
    %217 = vmatmul.mubr.bf16.gmra.mxu0 %v126
    %v218 = vpop.f32.mrf.mxu0
    %v219 = vadd.f32 %v43, %v218
    %v220 = vpop.f32.mrf.mxu0
    %v221 = vpop.f32.mrf.mxu0
    %v222 = vadd.f32 %v43, %v221
    %v223 = vpop.f32.mrf.mxu0
    %224 = vdwg.mxu0
    %225 = vst [vmem:[#allocation2] sm:$0xff] %v163
    %226 = vst [vmem:[#allocation2 + $0x8] sm:$0xff] %v166
    %227 = vst [vmem:[#allocation2 + $0x10] sm:$0xff] %v171
    %228 = vst [vmem:[#allocation2 + $0x18] sm:$0xff] %v174
    %229 = vst [vmem:[#allocation2 + $0x20] sm:$0xff] %v179
    %230 = vst [vmem:[#allocation2 + $0x28] sm:$0xff] %v182
    %231 = vst [vmem:[#allocation2 + $0x30] sm:$0xff] %v187
    %232 = vst [vmem:[#allocation2 + $0x38] sm:$0xff] %v190
    %233 = vst [vmem:[#allocation2 + $0x40] sm:$0xff] %v195
    %234 = vst [vmem:[#allocation2 + $0x48] sm:$0xff] %v198
    %235 = vst [vmem:[#allocation2 + $0x50] sm:$0xff] %v203
    %236 = vst [vmem:[#allocation2 + $0x58] sm:$0xff] %v206
    %237 = vst [vmem:[#allocation2 + $0x60] sm:$0xff] %v211
    %238 = vst [vmem:[#allocation2 + $0x68] sm:$0xff] %v214
    %239 = vst [vmem:[#allocation2 + $0x70] sm:$0xff] %v219
    %240 = vst [vmem:[#allocation2 + $0x78] sm:$0xff] %v222
    // Predicated region
    $region14: #{vilt_patch_embeddings_forward.1} parent=1 // pred_check
      _
    $region15: #{vilt_patch_embeddings_forward.1} parent=1 // pred_check_branch
      %242 = sbr.rel (0) target = $region17
    $region16: #{vilt_patch_embeddings_forward.1} parent=1 // pred_region
      %s244 = ssub.s32 2048, 2048
      %245 = vsyncadd [#allocation3], %s244
      %s246 = sshll.u32 [#allocation2], 4
      %s247 = int_to_ptr.vmem [resolvable:$true] %s246
      %252 = dma.vmem_to_hbm [thread:$0]  %s247, 2048, %s3, [#allocation3], 128, 128, 8
    $region17: #{vilt_patch_embeddings_forward.1} parent=1 // pred_fallthru
      _
    // Predicated region
    $region18: #{vilt_patch_embeddings_forward.1} parent=1 // pred_check
      _
    $region19: #{vilt_patch_embeddings_forward.1} parent=1 // pred_check_branch
      %254 = sbr.rel (0) target = $region21
    $region20: #{vilt_patch_embeddings_forward.1} parent=1 // pred_region
      %255 = dma.done [#allocation3], 2048
    $region21: #{vilt_patch_embeddings_forward.1} parent=1 // pred_fallthru
      _
    %256 = vsyncpa [#allocation3], 1

</llo_original>
